<compile_context>
chip_gen: v7x
topology: tpu7x:2x2x1
jax: 0.10.0
libtpu: 0.0.40
codegen_flags: <defaults>
</compile_context>

<pallas_src>
import math
import functools

import jax
import jax.numpy as jnp
from jax import lax
from jax.experimental import pallas as pl
from jax.experimental.pallas import tpu as pltpu

_SQRT2 = 2.0 ** 0.5
_K_SINGLE_MAX = 2048   # full-K tile whenever in_dim <= this
_TM_MAX = 512
_TN_MAX = 1024


def _cdiv(a, b):
    return (a + b - 1) // b


def _round_up(x, m):
    return ((x + m - 1) // m) * m


# --------------------------- kernel bodies ---------------------------

def _make_single_k_kernel(scale, activation, has_bias):
    """Common case: K fits in one tile -> no accumulator scratch, no pl.when."""

    def kernel(x_ref, w_ref, *rest):
        if has_bias:
            b_ref, o_ref = rest
        else:
            (o_ref,) = rest
            b_ref = None

        # x: (tm, K), w: (tn, K); contract K on both (== x @ w.T), f32 MXU acc.
        acc = lax.dot_general(
            x_ref[...], w_ref[...],
            dimension_numbers=(((1,), (1,)), ((), ())),
            preferred_element_type=jnp.float32,
        )
        out = acc * scale
        if has_bias:
            out = out + b_ref[...]                    # bias already f32 * lr_mul
        if activation == "lrelu":
            out = jnp.where(out >= 0.0, out, 0.2 * out) * _SQRT2
        o_ref[...] = out.astype(o_ref.dtype)

    return kernel


def _make_multi_k_kernel(scale, activation, has_bias):
    """Fallback for very large in_dim: reduction-last grid, f32 VMEM accumulator."""

    def kernel(x_ref, w_ref, *rest):
        if has_bias:
            b_ref, o_ref, acc_ref = rest
        else:
            o_ref, acc_ref = rest
            b_ref = None

        k = pl.program_id(2)

        @pl.when(k == 0)
        def _init():
            acc_ref[...] = jnp.zeros_like(acc_ref)

        acc_ref[...] += lax.dot_general(
            x_ref[...], w_ref[...],
            dimension_numbers=(((1,), (1,)), ((), ())),
            preferred_element_type=jnp.float32,
        )

        @pl.when(k == pl.num_programs(2) - 1)
        def _finalize():
            out = acc_ref[...] * scale
            if has_bias:
                out = out + b_ref[...]
            if activation == "lrelu":
                out = jnp.where(out >= 0.0, out, 0.2 * out) * _SQRT2
            o_ref[...] = out.astype(o_ref.dtype)

    return kernel


# --------------------------- tile selection ---------------------------

def _choose_tiles(M, N, K):
    tm = min(_TM_MAX, _round_up(M, 8))
    if N <= 128:
        tn = N                                   # last dim == full array dim
    else:
        tn = _round_up(N, 128)
        if tn > _TN_MAX:
            tn = 512                             # partial boundary block is cheap

    if K <= _K_SINGLE_MAX:
        tk, ksteps = K, 1
    else:
        ksteps = _cdiv(K, _K_SINGLE_MAX)
        tk = _round_up(_cdiv(K, ksteps), 128)    # minimize K padding
        ksteps = _cdiv(K, tk)

    # v7x: make sure both TensorCores get a parallel tile when it costs nothing.
    if _cdiv(M, tm) * _cdiv(N, tn) == 1:
        if N >= 256 and tn % 256 == 0:
            tn //= 2
        elif M >= 16:
            tm = _round_up(_cdiv(M, 2), 8)

    return tm, tn, tk, ksteps


# ------------------------------ wrapper ------------------------------

@functools.partial(jax.jit, static_argnames=("lr_mul", "activation", "has_bias"))
def _equal_linear_impl(x, weight, bias, *, lr_mul, activation, has_bias):
    if activation not in (None, "lrelu"):
        raise NotImplementedError(activation)

    M, K = x.shape
    N = weight.shape[0]
    scale = (1.0 / math.sqrt(K)) * lr_mul

    tm, tn, tk, ksteps = _choose_tiles(M, N, K)

    if ksteps == 1:
        operands = [x, weight]
        grid = (_cdiv(M, tm), _cdiv(N, tn))
        in_specs = [
            pl.BlockSpec((tm, tk), lambda i, j: (i, 0)),
            pl.BlockSpec((tn, tk), lambda i, j: (j, 0)),
        ]
        bias_spec = pl.BlockSpec((1, tn), lambda i, j: (0, j))
        out_spec = pl.BlockSpec((tm, tn), lambda i, j: (i, j))
        scratch = []
        semantics = ("parallel", "parallel")
        kernel = _make_single_k_kernel(scale, activation, has_bias)
    else:
        # Rare path (in_dim > 2048): K must be zero-padded (reduction-axis garbage
        # would corrupt valid outputs); M/N are still left un-padded.
        Kp = ksteps * tk
        xp = jnp.pad(x, ((0, 0), (0, Kp - K))) if Kp != K else x
        wp = jnp.pad(weight, ((0, 0), (0, Kp - K))) if Kp != K else weight
        operands = [xp, wp]
        grid = (_cdiv(M, tm), _cdiv(N, tn), ksteps)
        in_specs = [
            pl.BlockSpec((tm, tk), lambda i, j, k: (i, k)),
            pl.BlockSpec((tn, tk), lambda i, j, k: (j, k)),
        ]
        bias_spec = pl.BlockSpec((1, tn), lambda i, j, k: (0, j))
        out_spec = pl.BlockSpec((tm, tn), lambda i, j, k: (i, j))
        scratch = [pltpu.VMEM((tm, tn), jnp.float32)]
        semantics = ("parallel", "parallel", "arbitrary")
        kernel = _make_multi_k_kernel(scale, activation, has_bias)

    if has_bias:
        # Fold lr_mul into the bias once, keep it f32 for the epilogue add.
        operands.append((bias.astype(jnp.float32) * lr_mul).reshape(1, N))
        in_specs.append(bias_spec)

    # VMEM budget: double-buffered tiles (+ accumulator), capped for v7x (64 MiB).
    footprint = 2 * 4 * (tm * tk + tn * tk + tm * tn + (tn if has_bias else 0))
    if scratch:
        footprint += 4 * tm * tn
    vmem_limit = min(48 * 1024 * 1024, max(32 * 1024 * 1024, int(footprint * 1.5)))

    return pl.pallas_call(
        kernel,
        out_shape=jax.ShapeDtypeStruct((M, N), x.dtype),
        grid_spec=pltpu.PrefetchScalarGridSpec(
            num_scalar_prefetch=0,
            grid=grid,
            in_specs=in_specs,
            out_specs=out_spec,
            scratch_shapes=scratch,
        ),
        compiler_params=pltpu.CompilerParams(
            dimension_semantics=semantics,
            vmem_limit_bytes=vmem_limit,
        ),
    )(*operands)


def equal_linear(x, weight, bias, *, lr_mul=1.0, activation=None):
    """Pallas implementation of EqualLinear.forward.

    x:      (batch, in_dim)
    weight: (out_dim, in_dim)   (PyTorch nn.Linear layout, never transposed in HBM)
    bias:   (out_dim,) or None
    """
    has_bias = bias is not None
    if not has_bias:
        bias = jnp.zeros((weight.shape[0],), dtype=x.dtype)   # ignored placeholder
    return _equal_linear_impl(
        x, weight, bias, lr_mul=float(lr_mul), activation=activation, has_bias=has_bias
    )


def equal_linear_ref(x, weight, bias, *, lr_mul=1.0, activation=None):
    """Pure-JAX reference for correctness checking."""
    in_dim = x.shape[-1]
    scale = (1.0 / math.sqrt(in_dim)) * lr_mul
    out = jnp.dot(x, (weight * scale).T, preferred_element_type=jnp.float32)
    b = (jnp.zeros((weight.shape[0],), x.dtype) if bias is None else bias) * lr_mul
    out = out + b
    if activation == "lrelu":
        out = jnp.where(out >= 0, out, 0.2 * out) * _SQRT2
    return out.astype(x.dtype)


if __name__ == "__main__":
    key = jax.random.PRNGKey(0)

    # ---- Small test (module-sized shapes: batch=8, in_dim=32, out_dim=16) ----
    k_x, k_w, key = jax.random.split(key, 3)
    B, in_dim, out_dim = 8, 32, 16
    lr_mul = 0.5
    x = jax.random.normal(k_x, (B, in_dim), dtype=jnp.float32)
    weight = jax.random.normal(k_w, (out_dim, in_dim), dtype=jnp.float32) / lr_mul
    bias = jnp.full((out_dim,), 0.3, dtype=jnp.float32)

    out_lin = jax.block_until_ready(equal_linear(x, weight, bias, lr_mul=lr_mul))
    ref_lin = equal_linear_ref(x, weight, bias, lr_mul=lr_mul)
    assert out_lin.shape == (B, out_dim)
    assert jnp.allclose(out_lin, ref_lin, atol=1e-5, rtol=1e-5), "linear path mismatch"

    out_act = jax.block_until_ready(
        equal_linear(x, weight, bias, lr_mul=lr_mul, activation="lrelu"))
    ref_act = equal_linear_ref(x, weight, bias, lr_mul=lr_mul, activation="lrelu")
    assert jnp.allclose(out_act, ref_act, atol=1e-5, rtol=1e-5), "lrelu path mismatch"

    out_nb = jax.block_until_ready(equal_linear(x, weight, None, lr_mul=lr_mul))
    ref_nb = equal_linear_ref(x, weight, None, lr_mul=lr_mul)
    assert jnp.allclose(out_nb, ref_nb, atol=1e-5, rtol=1e-5), "no-bias path mismatch"

    # ---- Non-aligned shapes: partial M/N boundary blocks, no wrapper padding ----
    k_x2, k_w2, key = jax.random.split(key, 3)
    M2, K2, N2 = 300, 640, 520
    x2 = jax.random.normal(k_x2, (M2, K2), dtype=jnp.float32)
    w2 = jax.random.normal(k_w2, (N2, K2), dtype=jnp.float32)
    b2 = jnp.full((N2,), 0.1, dtype=jnp.float32)
    out2 = jax.block_until_ready(equal_linear(x2, w2, b2, activation="lrelu"))
    ref2 = equal_linear_ref(x2, w2, b2, activation="lrelu")
    assert out2.shape == (M2, N2)
    assert jnp.allclose(out2, ref2, atol=1e-3, rtol=1e-3), "tiled lrelu mismatch"

    # ---- Large in_dim: multi-K-step path (accumulator) + v7x N-split ----
    k_x3, k_w3, key = jax.random.split(key, 3)
    M3, K3, N3 = 64, 2560, 512
    x3 = jax.random.normal(k_x3, (M3, K3), dtype=jnp.float32)
    w3 = jax.random.normal(k_w3, (N3, K3), dtype=jnp.float32)
    b3 = jnp.full((N3,), 0.05, dtype=jnp.float32)
    out3 = jax.block_until_ready(equal_linear(x3, w3, b3, activation=None))
    ref3 = equal_linear_ref(x3, w3, b3, activation=None)
    assert out3.shape == (M3, N3)
    assert jnp.allclose(out3, ref3, atol=1e-3, rtol=1e-3), "multi-K path mismatch"

    print("KERNEL_OK")
</pallas_src>

<mosaic_0001>
module attributes {stable_mosaic.version = 11 : i64} {
  func.func @kernel(%arg0: i32, %arg1: i32, %arg2: memref<8x32xf32, #tpu.memory_space<vmem>>, %arg3: memref<16x32xf32, #tpu.memory_space<vmem>>, %arg4: memref<1x16xf32, #tpu.memory_space<vmem>>, %arg5: memref<8x16xf32, #tpu.memory_space<vmem>>) attributes {dimension_semantics = [#tpu.dimension_semantics<parallel>, #tpu.dimension_semantics<parallel>], iteration_bounds = array<i64: 1, 1>, scalar_prefetch = 0 : i64, scratch_operands = 0 : i64, tpu.core_type = #tpu.core_type<tc>, window_params = [{transform_indices = @transform_0, window_bounds = array<i64: 8, 32>}, {transform_indices = @transform_1, window_bounds = array<i64: 16, 32>}, {transform_indices = @transform_2, window_bounds = array<i64: 1, 16>}, {transform_indices = @transform_3, window_bounds = array<i64: 8, 16>}]} {
    %c0 = arith.constant 0 : index
    %c0_0 = arith.constant 0 : index
    %0 = vector.load %arg2[%c0, %c0_0] : memref<8x32xf32, #tpu.memory_space<vmem>>, vector<8x32xf32>
    %c0_1 = arith.constant 0 : index
    %c0_2 = arith.constant 0 : index
    %1 = vector.load %arg3[%c0_1, %c0_2] : memref<16x32xf32, #tpu.memory_space<vmem>>, vector<16x32xf32>
    %cst = arith.constant dense<0.000000e+00> : vector<8x16xf32>
    %2 = tpu.matmul %0, %1, %cst {dimension_numbers = #tpu.dot_dimension_numbers<[1], [1], [0], [0], [0, 0, 1, 0], [], []>} : vector<8x32xf32>, vector<16x32xf32>, vector<8x16xf32> -> vector<8x16xf32>
    %cst_3 = arith.constant 0.0883883461 : f32
    %3 = vector.broadcast %cst_3 : f32 to vector<8x16xf32>
    %4 = arith.mulf %2, %3 : vector<8x16xf32>
    %c0_4 = arith.constant 0 : index
    %c0_5 = arith.constant 0 : index
    %5 = vector.load %arg4[%c0_4, %c0_5] : memref<1x16xf32, #tpu.memory_space<vmem>>, vector<1x16xf32>
    %6 = vector.broadcast %5 : vector<1x16xf32> to vector<8x16xf32>
    %7 = arith.addf %4, %6 : vector<8x16xf32>
    %c0_6 = arith.constant 0 : index
    %c0_7 = arith.constant 0 : index
    %8 = vector.load %arg5[%c0_6, %c0_7] : memref<8x16xf32, #tpu.memory_space<vmem>>, vector<8x16xf32>
    tpu.vector_store %arg5[%c0_6, %c0_7], %7 {strides = array<i32>} : memref<8x16xf32, #tpu.memory_space<vmem>>, vector<8x16xf32>,
    return
  }
  func.func @transform_0(%arg0: i32, %arg1: i32) -> (i32, i32) {
    %c0_i32 = arith.constant 0 : i32
    %c0_i32_0 = arith.constant 0 : i32
    return %arg0, %c0_i32 : i32, i32
  }
  func.func @transform_1(%arg0: i32, %arg1: i32) -> (i32, i32) {
    %c0_i32 = arith.constant 0 : i32
    %c0_i32_0 = arith.constant 0 : i32
    return %arg1, %c0_i32 : i32, i32
  }
  func.func @transform_2(%arg0: i32, %arg1: i32) -> (i32, i32) {
    %c0_i32 = arith.constant 0 : i32
    %c0_i32_0 = arith.constant 0 : i32
    return %c0_i32, %arg1 : i32, i32
  }
  func.func @transform_3(%arg0: i32, %arg1: i32) -> (i32, i32) {
    %c0_i32 = arith.constant 0 : i32
    return %arg0, %arg1 : i32, i32
  }
}

</mosaic_0001>

<llo_original>
// kernel: _equal_linear_impl.1
$region0: #{_equal_linear_impl.1}
  #allocation0 [shape = 'u32[]', space=smem, size = 0x4, offset = 0x4, fixed_abs, tag = 'smem constant byte address 0x4 - core index']
  #allocation1 [shape = 'u32[144,128]{1,0:T(1,128)}', space=vmem, size = 0x12000, scoped, tag = 'internal scratch']
  %s0 = inlined_call_operand.hbm [shape: f32[8,32], index: 0, kind: input, shape index: {}]
  %s1 = inlined_call_operand.hbm [shape: f32[16,32], index: 1, kind: input, shape index: {}]
  %s2 = inlined_call_operand.vmem [shape: f32[1,16], index: 2, kind: input, shape index: {}]
  %s3 = inlined_call_operand.hbm [shape: f32[8,16], index: 3, kind: output, shape index: {}]
  %s4 = sld [smem:[#allocation0]]
  $region30: #{_equal_linear_impl.1} parent=0
    _
  %s6 = ssub.s32 1, %s4
  %s7 = scalar_select 0, %s6, %s4
  $region1: #{_equal_linear_impl.1} parent=0
    #allocation2 [shape = 'u8[4096]{0}', space=vmem, size = 0x1000, scoped, tag = 'input window, operand 0, single buffered']
    #allocation3 [shape = 's32[1]{0}', space=sflag, size = 0x4, scoped, tag = 'scoped memory for _equal_linear_impl.1']
    #allocation4 [shape = 's32[1]{0}', space=sflag, size = 0x4, scoped, tag = 'scoped memory for _equal_linear_impl.1']
    #allocation5 [shape = 'u8[8192]{0}', space=vmem, size = 0x2000, scoped, tag = 'input window, operand 1, single buffered']
    #allocation6 [shape = 's32[1]{0}', space=sflag, size = 0x4, scoped, tag = 'scoped memory for _equal_linear_impl.1']
    #allocation7 [shape = 'u8[4096]{0}', space=vmem, size = 0x1000, scoped, tag = 'output window, operand 0, single buffered']
    %8 = vsyncpa [#allocation3], 0
    %9 = vsyncpa [#allocation6], 0
    %10 = vsyncpa [#allocation4], 0
    // Predicated region
    $region2: #{_equal_linear_impl.1} parent=1 // pred_check
      _
    $region3: #{_equal_linear_impl.1} parent=1 // pred_check_branch
      %12 = sbr.rel (0) target = $region5
    $region4: #{_equal_linear_impl.1} parent=1 // pred_region
      %s14 = ssub.s32 128, 128
      %15 = vsyncadd [#allocation3], %s14
      %s17 = sshll.u32 [#allocation2], 4
      %s18 = int_to_ptr.vmem [resolvable:$true] %s17
      %20 = dma.hbm_to_vmem [thread:$0]  %s0, 128, %s18, [#allocation3]
    $region5: #{_equal_linear_impl.1} parent=1 // pred_fallthru
      _
    // Predicated region
    $region6: #{_equal_linear_impl.1} parent=1 // pred_check
      _
    $region7: #{_equal_linear_impl.1} parent=1 // pred_check_branch
      %22 = sbr.rel (0) target = $region9
    $region8: #{_equal_linear_impl.1} parent=1 // pred_region
      %s24 = ssub.s32 256, 256
      %25 = vsyncadd [#allocation6], %s24
      %s26 = sshll.u32 [#allocation5], 4
      %s27 = int_to_ptr.vmem [resolvable:$true] %s26
      %32 = dma.hbm_to_vmem [thread:$0]  %s1, 256, %s27, [#allocation6], 128, 128, 8
    $region9: #{_equal_linear_impl.1} parent=1 // pred_fallthru
      _
    // Predicated region
    $region10: #{_equal_linear_impl.1} parent=1 // pred_check
      _
    $region11: #{_equal_linear_impl.1} parent=1 // pred_check_branch
      %34 = sbr.rel (0) target = $region13
    $region12: #{_equal_linear_impl.1} parent=1 // pred_region
      _
    $region13: #{_equal_linear_impl.1} parent=1 // pred_fallthru
      _
    // Predicated region
    $region14: #{_equal_linear_impl.1} parent=1 // pred_check
      _
    $region15: #{_equal_linear_impl.1} parent=1 // pred_check_branch
      %36 = sbr.rel (0) target = $region17
    $region16: #{_equal_linear_impl.1} parent=1 // pred_region
      %37 = dma.done [#allocation3], 128
    $region17: #{_equal_linear_impl.1} parent=1 // pred_fallthru
      _
    // Predicated region
    $region18: #{_equal_linear_impl.1} parent=1 // pred_check
      _
    $region19: #{_equal_linear_impl.1} parent=1 // pred_check_branch
      %39 = sbr.rel (0) target = $region21
    $region20: #{_equal_linear_impl.1} parent=1 // pred_region
      %40 = dma.done [#allocation6], 256
    $region21: #{_equal_linear_impl.1} parent=1 // pred_fallthru
      _
    %v41 = vld [vmem:[#allocation2] sm:$0xff]
    %v42 = vld [vmem:[#allocation5] sm:$0xff]
    %v43 = vld [vmem:[#allocation5 + $0x8] sm:$0xff]
    %vm44 = vcmask 261120
    %v46 = vsel %vm44, %v41, 0
    %v49 = vsel %vm44, %v42, 0
    %v52 = vsel %vm44, %v43, 0
    %54 = vmatprep.subr.mxu0 0.0
    %55 = vmatpush1.xpose.msra.mxu0 %v49
    %56 = vmatprep.subr.mxu0 0.0
    %57 = vmatpush1.xpose.msra.mxu0 %v52
    %58 = vmatprep.subr.mxu0 0.0
    %59 = vmatpush1.xpose.msra.mxu0 0.0
    %60 = vmatprep.subr.mxu0 0.0
    %61 = vmatpush1.xpose.msra.mxu0 0.0
    %62 = vmatprep.subr.mxu0 0.0
    %63 = vmatpush1.xpose.msra.mxu0 0.0
    %64 = vmatprep.subr.mxu0 0.0
    %65 = vmatpush1.xpose.msra.mxu0 0.0
    %66 = vmatprep.subr.mxu0 0.0
    %67 = vmatpush1.xpose.msra.mxu0 0.0
    %68 = vmatprep.subr.mxu0 0.0
    %69 = vmatpush1.xpose.msra.mxu0 0.0
    %70 = vmatprep.subr.mxu0 0.0
    %71 = vmatpush1.xpose.msra.mxu0 0.0
    %72 = vmatprep.subr.mxu0 0.0
    %73 = vmatpush1.xpose.msra.mxu0 0.0
    %74 = vmatprep.subr.mxu0 0.0
    %75 = vmatpush1.xpose.msra.mxu0 0.0
    %76 = vmatprep.subr.mxu0 0.0
    %77 = vmatpush1.xpose.msra.mxu0 0.0
    %78 = vmatprep.subr.mxu0 0.0
    %79 = vmatpush1.xpose.msra.mxu0 0.0
    %80 = vmatprep.subr.mxu0 0.0
    %81 = vmatpush1.xpose.msra.mxu0 0.0
    %82 = vmatprep.subr.mxu0 0.0
    %83 = vmatpush1.xpose.msra.mxu0 0.0
    %84 = vmatprep.subr.mxu0 0.0
    %85 = vmatpush1.xpose.msra.mxu0 0.0
    %86 = vmatprep.subr.mxu0 0.0
    %87 = vmatpush1.xpose.msra.mxu0 0.0
    %88 = vmatprep.subr.mxu0 0.0
    %89 = vmatpush1.xpose.msra.mxu0 0.0
    %90 = vmatprep.subr.mxu0 0.0
    %91 = vmatpush1.xpose.msra.mxu0 0.0
    %92 = vmatprep.subr.mxu0 0.0
    %93 = vmatpush1.xpose.msra.mxu0 0.0
    %94 = vmatprep.subr.mxu0 0.0
    %95 = vmatpush1.xpose.msra.mxu0 0.0
    %96 = vmatprep.subr.mxu0 0.0
    %97 = vmatpush1.xpose.msra.mxu0 0.0
    %98 = vmatprep.subr.mxu0 0.0
    %99 = vmatpush1.xpose.msra.mxu0 0.0
    %100 = vmatprep.subr.mxu0 0.0
    %101 = vmatpush1.xpose.msra.mxu0 0.0
    %102 = vmatprep.subr.mxu0 0.0
    %103 = vmatpush1.xpose.msra.mxu0 0.0
    %104 = vmatprep.subr.mxu0 0.0
    %105 = vmatpush1.xpose.msra.mxu0 0.0
    %106 = vmatprep.subr.mxu0 0.0
    %107 = vmatpush1.xpose.msra.mxu0 0.0
    %108 = vmatprep.subr.mxu0 0.0
    %109 = vmatpush1.xpose.msra.mxu0 0.0
    %110 = vmatprep.subr.mxu0 0.0
    %111 = vmatpush1.xpose.msra.mxu0 0.0
    %112 = vmatprep.subr.mxu0 0.0
    %113 = vmatpush1.xpose.msra.mxu0 0.0
    %114 = vmatprep.subr.mxu0 0.0
    %115 = vmatpush1.xpose.msra.mxu0 0.0
    %116 = vmatprep.subr.mxu0 0.0
    %117 = vmatpush1.xpose.msra.mxu0 0.0
    %118 = vmatprep.mubr.f32.mxu0 0.0
    %119 = vmatmul.mubr.f32.gmra.mrb[0].mxu0 %v46
    %v120 = vpop.f32.mrb[0].mxu0
    %v121 = vadd.f32 0.0, %v120
    %v122 = vpop.f32.mrb[0].mxu0
    %123 = vdwg.mxu0
    %v124 = vmul.f32 %v121, 0.088388346
    %v125 = vld [vmem:[%s2] sm:$0x1]
    %v127 = vlaneseq
    %v128 = vshrl.u32 %v127, 7
    %v129 = vsub.s32 0, %v128
    %v130 = vrot.slane %v125, %v129
    %v132 = vadd.f32 %v124, %v130
    %vm133 = vcmask 130048
    %134 = vst.msk [vmem:[#allocation7] sm:$0xff] %vm133, %v132
    // Predicated region
    $region22: #{_equal_linear_impl.1} parent=1 // pred_check
      _
    $region23: #{_equal_linear_impl.1} parent=1 // pred_check_branch
      %136 = sbr.rel (0) target = $region25
    $region24: #{_equal_linear_impl.1} parent=1 // pred_region
      %s138 = ssub.s32 128, 128
      %139 = vsyncadd [#allocation4], %s138
      %s141 = sshll.u32 [#allocation7], 4
      %s142 = int_to_ptr.vmem [resolvable:$true] %s141
      %144 = dma.vmem_to_hbm [thread:$0]  %s142, 128, %s3, [#allocation4]
    $region25: #{_equal_linear_impl.1} parent=1 // pred_fallthru
      _
    // Predicated region
    $region26: #{_equal_linear_impl.1} parent=1 // pred_check
      _
    $region27: #{_equal_linear_impl.1} parent=1 // pred_check_branch
      %146 = sbr.rel (0) target = $region29
    $region28: #{_equal_linear_impl.1} parent=1 // pred_region
      %147 = dma.done [#allocation4], 128
    $region29: #{_equal_linear_impl.1} parent=1 // pred_fallthru
      _
    %148 = vsyncpa [#allocation3], 1
    %149 = vsyncpa [#allocation6], 1
    %150 = vsyncpa [#allocation4], 1

</llo_original>
